<compile_context>
chip_gen: v6e
topology: v6e:2x2x1
jax: 0.10.0
libtpu: 0.0.40
codegen_flags: <defaults>
</compile_context>

<pallas_src>
import functools

import jax
import jax.numpy as jnp
from jax.experimental import pallas as pl
from jax.experimental.pallas import tpu as pltpu


def _round_up(x, m):
    return ((x + m - 1) // m) * m


def _vmem_capacity_bytes():
    """Physical VMEM of the current generation; conservative fallback (v7x)."""
    try:
        info = pltpu.get_tpu_info()
        cap = getattr(info, "vmem_capacity_bytes", None)
        if cap:
            return int(cap)
    except Exception:
        pass
    return 64 * 1024 * 1024


def _choose_tile_n(N, K, F, x_bytes, out_bytes, vmem_budget, max_tile_n):
    """Pick the N-tile: as large as the VMEM budget allows (amortizes the
    ~0.35 us per-step overhead), but small enough for >= ~4 grid steps so the
    pipeline has depth and v7x can shard the axis across both TensorCores."""
    per_row = 2 * (K * x_bytes + F * out_bytes)          # double-buffered in+out blocks
    resident = K * F * x_bytes + F * out_bytes           # weights + bias (grid-invariant)
    tn = (vmem_budget - 2 * resident) // max(per_row, 1)
    tn = min(tn, max_tile_n)
    tn = min(tn, max(8, -(-N // 4)))                     # >= ~4 grid steps when N allows
    tn = max(8, (tn // 8) * 8)                           # sublane multiple of 8
    tn = min(tn, _round_up(N, 8))                        # never larger than the problem
    return int(tn)


def _raw_feature_kernel(x_ref, w_ref, b_ref, o_ref, *, negative_slope):
    # x_ref: (TN, K) bf16 pooled activations
    # w_ref: (K, F)  bf16 flattened Conv3d weights
    # b_ref: (1, F)  f32 conv bias
    # o_ref: (TN, F) f32 output
    y = jnp.dot(x_ref[...], w_ref[...],
                preferred_element_type=jnp.float32)      # Conv3d == matmul (MXU, f32 acc)
    y = y + b_ref[...]                                   # conv bias (VPU, f32)
    o_ref[...] = jnp.maximum(y, negative_slope * y).astype(o_ref.dtype)  # LeakyReLU


def raw_feature_forward(x, conv_w, conv_b, *, maxpool_size=2, negative_slope=0.02,
                        compute_dtype=jnp.bfloat16, max_tile_n=8192):
    """x: (N, 1, sws, 8, 8) float32 (PyTorch NCDHW layout).
    conv_w: (F, 1, sws, 8//maxpool_size, 8//maxpool_size), conv_b: (F,).
    Returns (N, F) float32, matching torch.flatten(LeakyReLU(conv(maxpool(x))), 1)."""
    N, C, sws, H, W = x.shape
    assert C == 1
    p = max(int(maxpool_size), 1)
    hp, wp = H // p, W // p
    F = conv_w.shape[0]
    K = sws * hp * wp

    # --- MaxPool3d + flatten in XLA (single fused pass over x), then cast ---
    if p > 1:
        pooled = jnp.max(x[:, 0].reshape(N, sws, hp, p, wp, p), axis=(3, 5))
    else:
        pooled = x[:, 0]
    pooled = pooled.reshape(N, K).astype(compute_dtype)          # (N, K)

    # Flatten conv weights in the same (sws, hp, wp) C-order.
    w2 = conv_w.reshape(F, K).T.astype(compute_dtype)            # (K, F)
    b2 = conv_b.reshape(1, F).astype(jnp.float32)                # (1, F)

    # --- generation-aware tile / VMEM sizing ---
    x_bytes = jnp.dtype(compute_dtype).itemsize
    out_bytes = 4
    vmem_budget = int(_vmem_capacity_bytes() * 0.7)              # leave headroom
    TN = _choose_tile_n(N, K, F, x_bytes, out_bytes, vmem_budget, max_tile_n)
    grid = (pl.cdiv(N, TN),)                                     # ragged last block is OK

    kernel = functools.partial(_raw_feature_kernel, negative_slope=negative_slope)

    out = pl.pallas_call(
        kernel,
        out_shape=jax.ShapeDtypeStruct((N, F), jnp.float32),
        grid_spec=pltpu.PrefetchScalarGridSpec(
            num_scalar_prefetch=0,
            grid=grid,
            in_specs=[
                pl.BlockSpec((TN, K), lambda i: (i, 0)),
                pl.BlockSpec((K, F), lambda i: (0, 0)),
                pl.BlockSpec((1, F), lambda i: (0, 0)),
            ],
            out_specs=pl.BlockSpec((TN, F), lambda i: (i, 0)),
        ),
        compiler_params=pltpu.CompilerParams(
            dimension_semantics=("parallel",),      # shards N across v7x's 2 TCs
            vmem_limit_bytes=vmem_budget,
        ),
        cost_estimate=pl.CostEstimate(
            flops=2 * N * K * F,
            transcendentals=0,
            bytes_accessed=(N * K * x_bytes + K * F * x_bytes
                            + F * out_bytes + N * F * out_bytes),
        ),
    )(pooled, w2, b2)

    return out


def _reference_forward_f32(x, conv_w, conv_b, *, maxpool_size=2, negative_slope=0.02):
    """Pure-JAX f32 reference mirroring the PyTorch module (eval mode)."""
    N, _, sws, H, W = x.shape
    p = max(maxpool_size, 1)
    pooled = jnp.max(x[:, 0].reshape(N, sws, H // p, p, W // p, p), axis=(3, 5))
    flat = pooled.reshape(N, -1)
    F = conv_w.shape[0]
    y = flat @ conv_w.reshape(F, -1).T + conv_b
    return jnp.where(y > 0, y, negative_slope * y)


def _reference_forward_bf16(x, conv_w, conv_b, *, maxpool_size=2, negative_slope=0.02):
    """Reference with the same bf16-input / f32-accumulate numerics as the kernel."""
    N, _, sws, H, W = x.shape
    p = max(maxpool_size, 1)
    pooled = jnp.max(x[:, 0].reshape(N, sws, H // p, p, W // p, p), axis=(3, 5))
    flat = pooled.reshape(N, -1).astype(jnp.bfloat16)
    F = conv_w.shape[0]
    w = conv_w.reshape(F, -1).T.astype(jnp.bfloat16)
    y = jnp.dot(flat, w, preferred_element_type=jnp.float32) + conv_b
    return jnp.maximum(y, negative_slope * y)


if __name__ == "__main__":
    # Small shapes consistent with the module: batch=2, sws=8, 8x8 BES grid,
    # 48 conv filters (module default num_filters=48).
    N, sws, num_filters, maxpool_size = 2, 8, 48, 2
    spatial = 8 // maxpool_size
    fan_in = sws * spatial * spatial          # Conv3d fan-in = 1*sws*4*4

    key = jax.random.PRNGKey(0)
    kx, kw, kb = jax.random.split(key, 3)

    x = jax.random.normal(kx, (N, 1, sws, 8, 8), dtype=jnp.float32)

    # Deterministic parameter init (PyTorch-style uniform(-1/sqrt(fan_in), 1/sqrt(fan_in))).
    bound = 1.0 / jnp.sqrt(jnp.float32(fan_in))
    conv_w = jax.random.uniform(kw, (num_filters, 1, sws, spatial, spatial),
                                dtype=jnp.float32, minval=-bound, maxval=bound)
    conv_b = jax.random.uniform(kb, (num_filters,), dtype=jnp.float32,
                                minval=-bound, maxval=bound)

    out = raw_feature_forward(x, conv_w, conv_b,
                              maxpool_size=maxpool_size, negative_slope=0.02)
    out = jax.block_until_ready(out)
    assert out.shape == (N, num_filters)

    # Numerics-matched reference (bf16 inputs, f32 accumulation): tight tolerance.
    ref_bf16 = _reference_forward_bf16(x, conv_w, conv_b,
                                       maxpool_size=maxpool_size, negative_slope=0.02)
    assert jnp.allclose(out, ref_bf16, atol=1e-3, rtol=1e-3), "mismatch vs bf16 reference"

    # Full-precision PyTorch-equivalent reference: loose tolerance (bf16 streaming).
    ref_f32 = _reference_forward_f32(x, conv_w, conv_b,
                                     maxpool_size=maxpool_size, negative_slope=0.02)
    assert jnp.allclose(out, ref_f32, atol=5e-2, rtol=5e-2), "mismatch vs f32 reference"

    print("KERNEL_OK")
</pallas_src>

<mosaic_0001>
module attributes {stable_mosaic.version = 11 : i64} {
  func.func @_raw_feature_kernel(%arg0: i32, %arg1: memref<8x128xbf16, #tpu.memory_space<vmem>>, %arg2: memref<128x48xbf16, #tpu.memory_space<vmem>>, %arg3: memref<1x48xf32, #tpu.memory_space<vmem>>, %arg4: memref<8x48xf32, #tpu.memory_space<vmem>>) attributes {dimension_semantics = [#tpu.dimension_semantics<parallel>], iteration_bounds = array<i64: 1>, scalar_prefetch = 0 : i64, scratch_operands = 0 : i64, tpu.core_type = #tpu.core_type<tc>, window_params = [{transform_indices = @transform_0, window_bounds = array<i64: 8, 128>}, {pipeline_mode = #tpu.pipeline_mode<synchronous>, transform_indices = @transform_1, window_bounds = array<i64: 128, 48>}, {pipeline_mode = #tpu.pipeline_mode<synchronous>, transform_indices = @transform_2, window_bounds = array<i64: 1, 48>}, {transform_indices = @transform_3, window_bounds = array<i64: 8, 48>}]} {
    %c0 = arith.constant 0 : index
    %c0_0 = arith.constant 0 : index
    %0 = vector.load %arg1[%c0, %c0_0] : memref<8x128xbf16, #tpu.memory_space<vmem>>, vector<8x128xbf16>
    %c0_1 = arith.constant 0 : index
    %c0_2 = arith.constant 0 : index
    %1 = vector.load %arg2[%c0_1, %c0_2] : memref<128x48xbf16, #tpu.memory_space<vmem>>, vector<128x48xbf16>
    %cst = arith.constant dense<0.000000e+00> : vector<8x48xf32>
    %2 = tpu.matmul %0, %1, %cst {dimension_numbers = #tpu.dot_dimension_numbers<[1], [0], [0], [1], [0, 0, 1, 1], [], []>} : vector<8x128xbf16>, vector<128x48xbf16>, vector<8x48xf32> -> vector<8x48xf32>
    %c0_3 = arith.constant 0 : index
    %c0_4 = arith.constant 0 : index
    %3 = vector.load %arg3[%c0_3, %c0_4] : memref<1x48xf32, #tpu.memory_space<vmem>>, vector<1x48xf32>
    %4 = vector.broadcast %3 : vector<1x48xf32> to vector<8x48xf32>
    %5 = arith.addf %2, %4 : vector<8x48xf32>
    %cst_5 = arith.constant 2.000000e-02 : f32
    %6 = vector.broadcast %cst_5 : f32 to vector<8x48xf32>
    %7 = arith.mulf %6, %5 : vector<8x48xf32>
    %8 = arith.maximumf %5, %7 : vector<8x48xf32>
    %c0_6 = arith.constant 0 : index
    %c0_7 = arith.constant 0 : index
    %9 = vector.load %arg4[%c0_6, %c0_7] : memref<8x48xf32, #tpu.memory_space<vmem>>, vector<8x48xf32>
    tpu.vector_store %arg4[%c0_6, %c0_7], %8 {strides = array<i32>} : memref<8x48xf32, #tpu.memory_space<vmem>>, vector<8x48xf32>,
    return
  }
  func.func @transform_0(%arg0: i32) -> (i32, i32) {
    %c0_i32 = arith.constant 0 : i32
    %c0_i32_0 = arith.constant 0 : i32
    return %arg0, %c0_i32 : i32, i32
  }
  func.func @transform_1(%arg0: i32) -> (i32, i32) {
    %c0_i32 = arith.constant 0 : i32
    %c0_i32_0 = arith.constant 0 : i32
    %c0_i32_1 = arith.constant 0 : i32
    return %c0_i32, %c0_i32_0 : i32, i32
  }
  func.func @transform_2(%arg0: i32) -> (i32, i32) {
    %c0_i32 = arith.constant 0 : i32
    %c0_i32_0 = arith.constant 0 : i32
    %c0_i32_1 = arith.constant 0 : i32
    return %c0_i32, %c0_i32_0 : i32, i32
  }
  func.func @transform_3(%arg0: i32) -> (i32, i32) {
    %c0_i32 = arith.constant 0 : i32
    %c0_i32_0 = arith.constant 0 : i32
    return %arg0, %c0_i32 : i32, i32
  }
}

</mosaic_0001>

<llo_original>
// kernel: tpu_custom_call.1
$region0: #{tpu_custom_call.1}
  #allocation0 [shape = 'u32[]', space=smem, size = 0x4, offset = 0x4, fixed_abs, tag = 'smem constant byte address 0x4 - core index']
  #allocation1 [shape = 'u32[144,128]{1,0:T(1,128)}', space=vmem, size = 0x12000, scoped, tag = 'internal scratch']
  %s0 = inlined_call_operand.vmem [shape: bf16[2,128], index: 0, kind: input, shape index: {}]
  %s1 = inlined_call_operand.vmem [shape: bf16[128,48], index: 1, kind: input, shape index: {}]
  %s2 = inlined_call_operand.vmem [shape: f32[1,48], index: 2, kind: input, shape index: {}]
  %s3 = inlined_call_operand.hbm [shape: f32[2,48], index: 3, kind: output, shape index: {}]
  %s4 = sld [smem:[#allocation0]]
  $region22: #{tpu_custom_call.1} parent=0
    _
  %s6 = ssub.s32 1, %s4
  %s7 = scalar_select 0, %s6, %s4
  $region1: #{tpu_custom_call.1} parent=0
    #allocation2 [shape = 'u8[4096]{0}', space=vmem, size = 0x1000, scoped, tag = 'output window, operand 0, single buffered']
    #allocation3 [shape = 's32[1]{0}', space=sflag, size = 0x4, scoped, tag = 'scoped memory for tpu_custom_call.1']
    %8 = vsyncpa [#allocation3], 0
    // Predicated region
    $region2: #{tpu_custom_call.1} parent=1 // pred_check
      _
    $region3: #{tpu_custom_call.1} parent=1 // pred_check_branch
      %10 = sbr.rel (0) target = $region5
    $region4: #{tpu_custom_call.1} parent=1 // pred_region
      _
    $region5: #{tpu_custom_call.1} parent=1 // pred_fallthru
      _
    // Predicated region
    $region6: #{tpu_custom_call.1} parent=1 // pred_check
      _
    $region7: #{tpu_custom_call.1} parent=1 // pred_check_branch
      %12 = sbr.rel (0) target = $region9
    $region8: #{tpu_custom_call.1} parent=1 // pred_region
      _
    $region9: #{tpu_custom_call.1} parent=1 // pred_fallthru
      _
    // Predicated region
    $region10: #{tpu_custom_call.1} parent=1 // pred_check
      _
    $region11: #{tpu_custom_call.1} parent=1 // pred_check_branch
      %14 = sbr.rel (0) target = $region13
    $region12: #{tpu_custom_call.1} parent=1 // pred_region
      _
    $region13: #{tpu_custom_call.1} parent=1 // pred_fallthru
      _
    %v16 = vld [vmem:[%s0] sm:$0x1]
    %v17 = vld [vmem:[%s0 + $0x1] sm:$0x1]
    %v18 = vld [vmem:[%s0 + $0x2] sm:$0x1]
    %v19 = vld [vmem:[%s0 + $0x3] sm:$0x1]
    %v20 = vld [vmem:[%s1] sm:$0xf]
    %v21 = vld [vmem:[%s1 + $0x4] sm:$0xf]
    %v22 = vld [vmem:[%s1 + $0x8] sm:$0xf]
    %v23 = vld [vmem:[%s1 + $0xc] sm:$0xf]
    %v24 = vld [vmem:[%s1 + $0x10] sm:$0xf]
    %v25 = vld [vmem:[%s1 + $0x14] sm:$0xf]
    %v26 = vld [vmem:[%s1 + $0x18] sm:$0xf]
    %v27 = vld [vmem:[%s1 + $0x1c] sm:$0xf]
    %v28 = vld [vmem:[%s1 + $0x20] sm:$0xf]
    %v29 = vld [vmem:[%s1 + $0x24] sm:$0xf]
    %v30 = vld [vmem:[%s1 + $0x28] sm:$0xf]
    %v31 = vld [vmem:[%s1 + $0x2c] sm:$0xf]
    %v32 = vld [vmem:[%s1 + $0x30] sm:$0xf]
    %v33 = vld [vmem:[%s1 + $0x34] sm:$0xf]
    %v34 = vld [vmem:[%s1 + $0x38] sm:$0xf]
    %v35 = vld [vmem:[%s1 + $0x3c] sm:$0xf]
    %v36 = vld [vmem:[%s2] sm:$0x1]
    %v38 = vlaneseq
    %v39 = vshrl.u32 %v38, 7
    %v40 = vsub.s32 0, %v39
    %v41 = vrot.slane %v36, %v40
    %v47 = vcombine.low %v16, %v17
    %v48 = vcombine.low %v18, %v19
    %v50 = vunpack.c.l.s4 1966171168
    %v51 = vunpack.c.0.s8 %v50
    %v52 = vlaneseq
    %v53 = vshrl.u32 %v52, 7
    %v54 = vsub.s32 %v51, %v53
    %v55 = vrot.slane %v47, %v54
    %v57 = vunpack.c.l.s4 1966171168
    %v58 = vunpack.c.0.s8 %v57
    %v59 = vlaneseq
    %v60 = vshrl.u32 %v59, 7
    %v61 = vsub.s32 %v58, %v60
    %v62 = vrot.slane %v48, %v61
    %v63 = vcombine.low %v55, %v62
    %v65 = vunpack.c.l.s4 1966171168
    %v66 = vunpack.c.0.s8 %v65
    %v67 = vlaneseq
    %v68 = vshrl.u32 %v67, 7
    %v69 = vsub.s32 %v66, %v68
    %v70 = vrot.slane %v63, %v69
    %v88 = vunpack.c.l.b16 %v20
    %v89 = vunpack.c.l.b16 %v21
    %v90 = vunpack.c.l.b16 %v22
    %v91 = vunpack.c.l.b16 %v23
    %v92 = vunpack.c.l.b16 %v24
    %v93 = vunpack.c.l.b16 %v25
    %v94 = vunpack.c.l.b16 %v26
    %v95 = vunpack.c.l.b16 %v27
    %v96 = vunpack.c.l.b16 %v28
    %v97 = vunpack.c.l.b16 %v29
    %v98 = vunpack.c.l.b16 %v30
    %v99 = vunpack.c.l.b16 %v31
    %v100 = vunpack.c.l.b16 %v32
    %v101 = vunpack.c.l.b16 %v33
    %v102 = vunpack.c.l.b16 %v34
    %v103 = vunpack.c.l.b16 %v35
    %v104 = vpack.c.b16 %v89, %v88
    %v105 = vpack.c.b16 %v91, %v90
    %v106 = vpack.c.b16 %v93, %v92
    %v107 = vpack.c.b16 %v95, %v94
    %v108 = vpack.c.b16 %v97, %v96
    %v109 = vpack.c.b16 %v99, %v98
    %v110 = vpack.c.b16 %v101, %v100
    %v111 = vpack.c.b16 %v103, %v102
    %120 = vmatprep.subr.bf16.mxu0 0
    %121 = vmatpush1.bf16.msra.mxu0 %v111
    %122 = vmatprep.subr.bf16.mxu0 0
    %123 = vmatpush1.bf16.msra.mxu0 %v110
    %124 = vmatprep.subr.bf16.mxu0 0
    %125 = vmatpush1.bf16.msra.mxu0 %v109
    %126 = vmatprep.subr.bf16.mxu0 0
    %127 = vmatpush1.bf16.msra.mxu0 %v108
    %128 = vmatprep.subr.bf16.mxu0 0
    %129 = vmatpush1.bf16.msra.mxu0 %v107
    %130 = vmatprep.subr.bf16.mxu0 0
    %131 = vmatpush1.bf16.msra.mxu0 %v106
    %132 = vmatprep.subr.bf16.mxu0 0
    %133 = vmatpush1.bf16.msra.mxu0 %v105
    %134 = vmatprep.subr.bf16.mxu0 0
    %135 = vmatpush1.bf16.msra.mxu0 %v104
    %136 = vmatprep.subr.bf16.mxu0 0
    %137 = vmatpush2.bf16.msra.mxu0 0
    %138 = vmatprep.subr.bf16.mxu0 0
    %139 = vmatpush2.bf16.msra.mxu0 0
    %140 = vmatprep.subr.bf16.mxu0 0
    %141 = vmatpush2.bf16.msra.mxu0 0
    %142 = vmatprep.subr.bf16.mxu0 0
    %143 = vmatpush2.bf16.msra.mxu0 0
    %144 = vmatprep.subr.bf16.mxu0 0
    %145 = vmatpush2.bf16.msra.mxu0 0
    %146 = vmatprep.subr.bf16.mxu0 0
    %147 = vmatpush2.bf16.msra.mxu0 0
    %148 = vmatprep.subr.bf16.mxu0 0
    %149 = vmatpush2.bf16.msra.mxu0 0
    %150 = vmatprep.subr.bf16.mxu0 0
    %151 = vmatpush2.bf16.msra.mxu0 0
    %152 = vmatprep.mubr.bf16.mxu0 0
    %153 = vmatmul.mubr.bf16.gmra.mxu0 %v70
    %v154 = vpop.f32.mrf.mxu0
    %v155 = vadd.f32 %v41, %v154
    %v156 = vpop.f32.mrf.mxu0
    %v157 = vpop.f32.mrf.mxu0
    %v158 = vpop.f32.mrf.mxu0
    %159 = vdwg.mxu0
    %v160 = vmul.f32 %v155, 0.02
    %v161 = vmax.f32 %v155, %v160
    %vm162 = vcmask 392192
    %163 = vst.msk [vmem:[#allocation2] sm:$0xff] %vm162, %v161
    // Predicated region
    $region14: #{tpu_custom_call.1} parent=1 // pred_check
      _
    $region15: #{tpu_custom_call.1} parent=1 // pred_check_branch
      %165 = sbr.rel (0) target = $region17
    $region16: #{tpu_custom_call.1} parent=1 // pred_region
      %s167 = ssub.s32 128, 32
      %168 = vsyncadd [#allocation3], %s167
      %s169 = sshll.u32 [#allocation2], 4
      %s170 = int_to_ptr.vmem [resolvable:$true] %s169
      %175 = dma.vmem_to_hbm [thread:$0]  %s170, 32, %s3, [#allocation3], 32, 32, 2
    $region17: #{tpu_custom_call.1} parent=1 // pred_fallthru
      _
    // Predicated region
    $region18: #{tpu_custom_call.1} parent=1 // pred_check
      _
    $region19: #{tpu_custom_call.1} parent=1 // pred_check_branch
      %177 = sbr.rel (0) target = $region21
    $region20: #{tpu_custom_call.1} parent=1 // pred_region
      %178 = dma.done [#allocation3], 128
    $region21: #{tpu_custom_call.1} parent=1 // pred_fallthru
      _
    %179 = vsyncpa [#allocation3], 1

</llo_original>
